<compile_context>
chip_gen: v5e
topology: v5e:2x2
jax: 0.10.0
libtpu: 0.0.40
codegen_flags: <defaults>
</compile_context>

<pallas_src>
import jax
import jax.numpy as jnp
from jax.experimental import pallas as pl
from jax.experimental.pallas import tpu as pltpu


def _chomp_kernel(x_ref, o_ref):
    # Copy the leading o_ref-width columns of the input tile.
    #  * preferred path: input tile is a (possibly wider) 128-multiple / full-L
    #    window, output tile spans the full l_out -> prefix slice.
    #  * fallback path: input/output tiles have the same width -> identity.
    o_ref[...] = x_ref[:, : o_ref.shape[-1]]


def _round_up(x: int, m: int) -> int:
    return ((x + m - 1) // m) * m


def chomp1d(x: jax.Array, chomp_size: int, *,
            block_budget_bytes: int = 8 * 1024 * 1024) -> jax.Array:
    """Pallas TPU implementation of Chomp1d.forward for x of shape (N, C, L)."""
    n, c, l = x.shape
    if chomp_size == 0:
        # Zero chomp: PyTorch would still make a .contiguous() copy; in JAX a
        # copy is semantically irrelevant, so treat it as a no-op.
        return x
    assert 0 < chomp_size < l, "chomp_size must be in (0, L)"
    l_out = l - chomp_size

    rows = n * c
    x2 = x.reshape(rows, l)                       # free, contiguous reshape
    dtype_bytes = jnp.dtype(x.dtype).itemsize

    # Sublane granularity per dtype packing (f32: 8, bf16: 16, int8/fp8: 32).
    sublane = 8 * max(1, 4 // dtype_bytes)

    # Smallest legal input window covering [0, l_out): a multiple of 128, or
    # the full L if rounding up would reach/exceed it.
    r128 = _round_up(l_out, 128)
    tl_in_pref = l if r128 >= l else r128

    if sublane * tl_in_pref * dtype_bytes <= block_budget_bytes:
        # Preferred path: a single time block. Output last dim = full l_out
        # (always a legal block dim) -> contiguous output slab per row block;
        # the chomp tail beyond tl_in_pref is never read.
        tl_in, tl_out = tl_in_pref, l_out
    elif l_out >= 128:
        # Fallback for very long sequences: lane-dense time tiles restricted
        # to [0, l_out); the last tile's store is masked at l_out by Pallas.
        tl_out = min(512, r128)
        tl_in = tl_out
    else:
        # Tiny l_out with an absurdly small budget: full-dim blocks.
        tl_out, tl_in = l_out, l

    # Row tile: multiple of `sublane`, capped so one input block stays within
    # the block budget. Double-buffered in+out then stays within the explicit
    # vmem_limit requested below on every chip generation.
    tr_cap = max(sublane,
                 (block_budget_bytes // (tl_in * dtype_bytes)) // sublane * sublane)
    tr = min(tr_cap, _round_up(rows, sublane))
    # Ensure >= 2 row blocks when possible so both v7x TensorCores get work.
    if rows > sublane and pl.cdiv(rows, tr) < 2:
        tr = max(sublane, _round_up(pl.cdiv(rows, 2), sublane))

    grid = (pl.cdiv(rows, tr), pl.cdiv(l_out, tl_out))

    # Scoped-VMEM request: worst case 2*(in block) + 2*(out block) plus
    # headroom; cap at 48 MiB (fits v5e/v6e's 128 MiB and v7x's 64 MiB).
    vmem_need = 2 * tr * (tl_in + tl_out) * dtype_bytes
    vmem_limit = min(48 * 1024 * 1024, max(2 * vmem_need, 32 * 1024 * 1024))

    out2 = pl.pallas_call(
        _chomp_kernel,
        out_shape=jax.ShapeDtypeStruct((rows, l_out), x.dtype),
        grid_spec=pltpu.PrefetchScalarGridSpec(
            num_scalar_prefetch=0,
            grid=grid,
            in_specs=[pl.BlockSpec((tr, tl_in), lambda r, t: (r, t))],
            out_specs=pl.BlockSpec((tr, tl_out), lambda r, t: (r, t)),
        ),
        compiler_params=pltpu.CompilerParams(
            dimension_semantics=("parallel", "parallel"),
            vmem_limit_bytes=vmem_limit,
        ),
        cost_estimate=pl.CostEstimate(
            flops=0,
            transcendentals=0,
            bytes_accessed=rows * (tl_in + l_out) * dtype_bytes,
        ),
    )(x2)

    return out2.reshape(n, c, l_out)


if __name__ == "__main__":
    key = jax.random.PRNGKey(0)

    # Small shape matching the PyTorch module's NCL convention.
    N, C, L = 2, 4, 16
    chomp_size = 3  # e.g. (kernel_size - 1) * dilation of a causal conv
    x = jax.random.normal(key, (N, C, L), dtype=jnp.float32)
    y = chomp1d(x, chomp_size)
    jax.block_until_ready(y)
    assert y.shape == (N, C, L - chomp_size)
    assert jnp.array_equal(y, x[:, :, :-chomp_size])

    k1, k2, k3 = jax.random.split(key, 3)

    # Preferred path with a 128-multiple input window strictly inside L
    # (tail beyond column 512 never read) + full-l_out contiguous output slab.
    x1 = jax.random.normal(k1, (2, 16, 640), dtype=jnp.float32)
    y1 = chomp1d(x1, 200)          # l_out = 440 -> tl_in = 512, tl_out = 440
    jax.block_until_ready(y1)
    assert jnp.array_equal(y1, x1[:, :, :-200])

    # Row count not a multiple of the sublane count (masked row store).
    x2 = jax.random.normal(k2, (1, 3, 40), dtype=jnp.float32)
    y2 = chomp1d(x2, 7)
    jax.block_until_ready(y2)
    assert jnp.array_equal(y2, x2[:, :, :-7])

    # Exercise the lane-dense fallback (multiple time tiles + masked tail
    # tile) by forcing an artificially small block budget.
    x3 = jax.random.normal(k3, (2, 16, 640), dtype=jnp.float32)
    y3 = chomp1d(x3, 100, block_budget_bytes=8 * 1024)
    jax.block_until_ready(y3)
    assert jnp.array_equal(y3, x3[:, :, :-100])

    print("KERNEL_OK")
</pallas_src>

<mosaic_0001>
module attributes {stable_mosaic.version = 11 : i64} {
  func.func @_chomp_kernel(%arg0: i32, %arg1: i32, %arg2: memref<8x16xf32, #tpu.memory_space<vmem>>, %arg3: memref<8x13xf32, #tpu.memory_space<vmem>>) attributes {dimension_semantics = [#tpu.dimension_semantics<parallel>, #tpu.dimension_semantics<parallel>], iteration_bounds = array<i64: 1, 1>, scalar_prefetch = 0 : i64, scratch_operands = 0 : i64, tpu.core_type = #tpu.core_type<tc>, window_params = [{transform_indices = @transform_0, window_bounds = array<i64: 8, 16>}, {transform_indices = @transform_1, window_bounds = array<i64: 8, 13>}]} {
    %c0 = arith.constant 0 : index
    %c0_0 = arith.constant 0 : index
    %0 = vector.load %arg2[%c0, %c0_0] : memref<8x16xf32, #tpu.memory_space<vmem>>, vector<8x13xf32>
    %c0_1 = arith.constant 0 : index
    %c0_2 = arith.constant 0 : index
    %1 = vector.load %arg3[%c0_1, %c0_2] : memref<8x13xf32, #tpu.memory_space<vmem>>, vector<8x13xf32>
    tpu.vector_store %arg3[%c0_1, %c0_2], %0 {strides = array<i32>} : memref<8x13xf32, #tpu.memory_space<vmem>>, vector<8x13xf32>,
    return
  }
  func.func @transform_0(%arg0: i32, %arg1: i32) -> (i32, i32) {
    %c0_i32 = arith.constant 0 : i32
    return %arg0, %arg1 : i32, i32
  }
  func.func @transform_1(%arg0: i32, %arg1: i32) -> (i32, i32) {
    %c0_i32 = arith.constant 0 : i32
    return %arg0, %arg1 : i32, i32
  }
}

</mosaic_0001>

<llo_original>
// kernel: tpu_custom_call.1
$region0: #{tpu_custom_call.1}
  #allocation0 [shape = 'u32[]', space=smem, size = 0x4, offset = 0x4, fixed_abs, tag = 'smem constant byte address 0x4 - core index']
  #allocation1 [shape = 'u32[72,128]{1,0:T(1,128)}', space=vmem, size = 0x9000, scoped, tag = 'internal scratch']
  %s0 = inlined_call_operand.hbm [shape: f32[8,16], index: 0, kind: input, shape index: {}]
  %s1 = inlined_call_operand.hbm [shape: f32[8,13], index: 1, kind: output, shape index: {}]
  %s2 = sld [smem:[#allocation0]]
  $region18: #{tpu_custom_call.1} parent=0
    _
  %s4 = ssub.s32 1, %s2
  %s5 = scalar_select 0, %s4, %s2
  $region1: #{tpu_custom_call.1} parent=0
    #allocation2 [shape = 'u8[4096]{0}', space=vmem, size = 0x1000, scoped, tag = 'input window, operand 0, single buffered']
    #allocation3 [shape = 's32[1]{0}', space=sflag, size = 0x4, scoped, tag = 'scoped memory for tpu_custom_call.1']
    #allocation4 [shape = 's32[1]{0}', space=sflag, size = 0x4, scoped, tag = 'scoped memory for tpu_custom_call.1']
    #allocation5 [shape = 'u8[4096]{0}', space=vmem, size = 0x1000, scoped, tag = 'output window, operand 0, single buffered']
    %6 = vsyncpa [#allocation3], 0
    %7 = vsyncpa [#allocation4], 0
    // Predicated region
    $region2: #{tpu_custom_call.1} parent=1 // pred_check
      _
    $region3: #{tpu_custom_call.1} parent=1 // pred_check_branch
      %9 = sbr.rel (0) target = $region5
    $region4: #{tpu_custom_call.1} parent=1 // pred_region
      %11 = vsyncadd [#allocation3], 0
      %s13 = sshll.u32 %s0, 4
      %s14 = int_to_ptr.hbm [resolvable:$true] %s13
      %s15 = sshll.u32 [#allocation2], 4
      %s16 = int_to_ptr.vmem [resolvable:$true] %s15
      %18 = dma.hbm_to_vmem [thread:$0]  %s14, 128, %s16, [#allocation3]
    $region5: #{tpu_custom_call.1} parent=1 // pred_fallthru
      _
    // Predicated region
    $region6: #{tpu_custom_call.1} parent=1 // pred_check
      _
    $region7: #{tpu_custom_call.1} parent=1 // pred_check_branch
      %20 = sbr.rel (0) target = $region9
    $region8: #{tpu_custom_call.1} parent=1 // pred_region
      %22 = dma.done [#allocation3], 128
    $region9: #{tpu_custom_call.1} parent=1 // pred_fallthru
      _
    %v23 = vld [vmem:[#allocation2] sm:$0xff]
    %vm24 = vcmask 105472
    %25 = vst.msk [vmem:[#allocation5] sm:$0xff] %vm24, %v23
    // Predicated region
    $region10: #{tpu_custom_call.1} parent=1 // pred_check
      _
    $region11: #{tpu_custom_call.1} parent=1 // pred_check_branch
      %27 = sbr.rel (0) target = $region13
    $region12: #{tpu_custom_call.1} parent=1 // pred_region
      %29 = vsyncadd [#allocation4], 0
      %s31 = sshll.u32 [#allocation5], 4
      %s32 = int_to_ptr.vmem [resolvable:$true] %s31
      %s33 = sshll.u32 %s1, 4
      %s34 = int_to_ptr.hbm [resolvable:$true] %s33
      %36 = dma.vmem_to_hbm [thread:$0]  %s32, 128, %s34, [#allocation4]
    $region13: #{tpu_custom_call.1} parent=1 // pred_fallthru
      _
    // Predicated region
    $region14: #{tpu_custom_call.1} parent=1 // pred_check
      _
    $region15: #{tpu_custom_call.1} parent=1 // pred_check_branch
      %38 = sbr.rel (0) target = $region17
    $region16: #{tpu_custom_call.1} parent=1 // pred_region
      %40 = dma.done [#allocation4], 128
    $region17: #{tpu_custom_call.1} parent=1 // pred_fallthru
      _
    %41 = vsyncpa [#allocation3], 1
    %42 = vsyncpa [#allocation4], 1

</llo_original>
